<compile_context>
chip_gen: v5e
topology: v5e:2x2
jax: 0.10.0
libtpu: 0.0.40
codegen_flags: <defaults>
</compile_context>

<pallas_src>
import jax
import jax.numpy as jnp
from jax.experimental import pallas as pl
from jax.experimental.pallas import tpu as pltpu


_NEG_BIG = jnp.float32(-1e30)  # "minus infinity" for padded class columns


def _round_up(x, m):
    return ((x + m - 1) // m) * m


def classifier_kernel(x_ref, w_ref, b_ref, o_ref, acc_ref):
    # x_ref: (TB, TK)  w_ref: (TK, Cpad)  b_ref: (1, Cpad)
    # o_ref: (TB, Cpad)  acc_ref: (TB, Cpad) f32 scratch
    k = pl.program_id(1)

    @pl.when(k == 0)
    def _():
        acc_ref[...] = jnp.zeros_like(acc_ref)

    # Native-dtype operands into the MXU, f32 accumulation.
    acc_ref[...] += jnp.dot(x_ref[...], w_ref[...],
                            preferred_element_type=jnp.float32)

    @pl.when(k == pl.num_programs(1) - 1)
    def _():
        logits = acc_ref[...] + b_ref[...]            # bias already f32
        # Numerically stable log-softmax over the class (lane) dim, in f32.
        m = jnp.max(logits, axis=-1, keepdims=True)
        shifted = logits - m
        lse = jnp.log(jnp.sum(jnp.exp(shifted), axis=-1, keepdims=True))
        o_ref[...] = (shifted - lse).astype(o_ref.dtype)


def prepare_params(weight, bias, mxu_dtype=None):
    """One-time parameter prep.

    weight: (C, D) in PyTorch Linear layout, bias: (C,).
    Returns weight as (D, Cpad) with zero-padded columns and bias as (1, Cpad)
    f32 with padded entries set to a large negative value so padded logits
    contribute exp(...) == 0 to the softmax normalizer.

    mxu_dtype: optionally cast the weight (e.g. jnp.bfloat16) to halve HBM
    traffic / double MXU rate when accuracy allows; softmax math stays f32.
    """
    C, D = weight.shape
    c_pad = _round_up(C, 128)
    w = weight.T
    if mxu_dtype is not None:
        w = w.astype(mxu_dtype)
    w_t = jnp.zeros((D, c_pad), dtype=w.dtype).at[:, :C].set(w)
    b = jnp.full((1, c_pad), _NEG_BIG, dtype=jnp.float32)
    b = b.at[0, :C].set(bias.astype(jnp.float32))
    return w_t, b


def _vmem_budgets():
    """(tiling_budget, vmem_limit, capacity) — generation aware."""
    cap = 64 * 1024 * 1024
    try:
        cap = int(pltpu.get_tpu_info().vmem_capacity_bytes)
    except Exception:
        pass
    if cap >= 120 * 1024 * 1024:                     # v5e / v6e: 128 MiB physical
        return 80 * 1024 * 1024, 100 * 1024 * 1024, cap
    return 32 * 1024 * 1024, 48 * 1024 * 1024, cap   # v7x: 64 MiB physical


def _choose_tiles(batch, d, c_pad, x_bytes, out_bytes, budget):
    """Pick (TB, TK, nk, vmem_need). TB multiple of 8; TK == d (resident weight,
    single-buffered) or a 128-multiple divisor of d (K-tiled, double-buffered)."""
    # --- K (input_dim) tiling decision --------------------------------------
    w_resident = d * c_pad * x_bytes                 # single-buffered whole weight
    if w_resident <= budget // 4 or d % 128 != 0:
        # Weight stays fully VMEM-resident.
        # TODO(synk): very large input_dim that is NOT a multiple of 128 still
        # lands here (K-tiling it would need explicit zero-padding of features).
        tk, w_bytes = d, w_resident
    else:
        tk = 512 if d % 512 == 0 else (256 if d % 256 == 0 else 128)
        w_bytes = 2 * tk * c_pad * x_bytes           # double-buffered K tiles
    nk = d // tk

    # --- batch tile ----------------------------------------------------------
    # 2x (pipelined x-tile row + out row) + f32 accumulator row.
    per_row = 2 * (tk * x_bytes + c_pad * out_bytes) + c_pad * 4
    tb = (budget - w_bytes) // max(per_row, 1)
    tb = max(8, min(1024, (tb // 8) * 8))
    if batch >= 16:                                  # >=2 batch steps -> both v7x TCs busy
        tb = min(tb, _round_up(-(-batch // 2), 8))
    tb = min(tb, _round_up(batch, 8))

    vmem_need = w_bytes + tb * per_row + (1 << 20)   # +1 MiB slack
    return int(tb), int(tk), int(nk), int(vmem_need)


def classifier_forward(features, w_prepared, b_prepared, num_class,
                       out_dtype=jnp.float32):
    """features: (B, D); w_prepared: (D, Cpad); b_prepared: (1, Cpad).
    Returns log-probabilities of shape (B, num_class) in out_dtype."""
    B, D = features.shape
    c_pad = w_prepared.shape[1]
    if features.dtype != w_prepared.dtype:           # match MXU operand dtype
        features = features.astype(w_prepared.dtype)

    budget, vmem_limit, cap = _vmem_budgets()
    out_bytes = jnp.dtype(out_dtype).itemsize
    tb, tk, nk, vmem_need = _choose_tiles(
        B, D, c_pad, features.dtype.itemsize, out_bytes, budget)
    nb = pl.cdiv(B, tb)
    vmem_limit = min(max(vmem_limit, vmem_need), max(cap - (2 << 20), vmem_limit))

    cost = pl.CostEstimate(
        flops=2 * B * D * c_pad,
        transcendentals=B * c_pad,
        bytes_accessed=(B * D * features.dtype.itemsize
                        + D * c_pad * w_prepared.dtype.itemsize
                        + B * c_pad * out_bytes + c_pad * 4),
    )

    def run(single_buffer_resident):
        x_spec = pl.BlockSpec((tb, tk), lambda i, k: (i, k))
        w_map = (lambda i, k: (0, 0)) if nk == 1 else (lambda i, k: (k, 0))
        b_map = lambda i, k: (0, 0)
        if single_buffer_resident:
            b_spec = pl.BlockSpec((1, c_pad), b_map, pipeline_mode=pl.Buffered(1))
            if nk == 1:   # whole weight resident -> no point double-buffering it
                w_spec = pl.BlockSpec((tk, c_pad), w_map,
                                      pipeline_mode=pl.Buffered(1))
            else:
                w_spec = pl.BlockSpec((tk, c_pad), w_map)
        else:
            w_spec = pl.BlockSpec((tk, c_pad), w_map)
            b_spec = pl.BlockSpec((1, c_pad), b_map)

        return pl.pallas_call(
            classifier_kernel,
            out_shape=jax.ShapeDtypeStruct((B, c_pad), out_dtype),
            grid=(nb, nk),
            in_specs=[x_spec, w_spec, b_spec],
            out_specs=pl.BlockSpec((tb, c_pad), lambda i, k: (i, 0)),
            scratch_shapes=[pltpu.VMEM((tb, c_pad), jnp.float32)],
            compiler_params=pltpu.CompilerParams(
                dimension_semantics=("parallel", "arbitrary"),
                vmem_limit_bytes=int(vmem_limit),
            ),
            cost_estimate=cost,
        )(features, w_prepared, b_prepared)

    try:
        out = run(single_buffer_resident=True)
    except Exception:
        # Fallback if this Pallas build rejects Buffered(1) on resident operands.
        out = run(single_buffer_resident=False)

    # TODO(synk): for num_class << 128 a fused NLL/argmax consumer would avoid
    # shipping the padded (B, 128) log-prob tile to HBM at all.
    return out[:, :num_class]


def init_params(key, input_dim, num_class):
    """Matches weights_init: xavier_uniform(gain=0.5) on weight, bias=0."""
    gain = 0.5
    limit = gain * jnp.sqrt(6.0 / (input_dim + num_class))
    weight = jax.random.uniform(
        key, (num_class, input_dim), minval=-limit, maxval=limit,
        dtype=jnp.float32)                       # PyTorch Linear layout (C, D)
    bias = jnp.zeros((num_class,), dtype=jnp.float32)
    return weight, bias


if __name__ == "__main__":
    B, input_dim, num_class = 8, 32, 16

    key = jax.random.PRNGKey(0)
    k_w, k_x = jax.random.split(key)
    weight, bias = init_params(k_w, input_dim, num_class)
    features = jax.random.normal(k_x, (B, input_dim), dtype=jnp.float32)

    # One-time param prep (transpose + class padding), outside the forward.
    # (Pass mxu_dtype=jnp.bfloat16 to halve HBM traffic when accuracy allows.)
    w_prep, b_prep = prepare_params(weight, bias)

    out = classifier_forward(features, w_prep, b_prep, num_class)
    out = jax.block_until_ready(out)

    # Reference check in plain JAX.
    logits_ref = features @ weight.T + bias
    ref = jax.nn.log_softmax(logits_ref, axis=1)
    assert out.shape == (B, num_class)
    assert jnp.allclose(out, ref, atol=1e-5, rtol=1e-5), "mismatch vs reference"

    print("KERNEL_OK")
</pallas_src>

<mosaic_0001>
module attributes {stable_mosaic.version = 11 : i64} {
  func.func @classifier_kernel(%arg0: i32, %arg1: i32, %arg2: memref<8x32xf32, #tpu.memory_space<vmem>>, %arg3: memref<32x128xf32, #tpu.memory_space<vmem>>, %arg4: memref<1x128xf32, #tpu.memory_space<vmem>>, %arg5: memref<8x128xf32, #tpu.memory_space<vmem>>, %arg6: memref<8x128xf32, #tpu.memory_space<vmem>>) attributes {dimension_semantics = [#tpu.dimension_semantics<parallel>, #tpu.dimension_semantics<arbitrary>], iteration_bounds = array<i64: 1, 1>, scalar_prefetch = 0 : i64, scratch_operands = 1 : i64, tpu.core_type = #tpu.core_type<tc>, window_params = [{transform_indices = @transform_0, window_bounds = array<i64: 8, 32>}, {pipeline_mode = #tpu.pipeline_mode<synchronous>, transform_indices = @transform_1, window_bounds = array<i64: 32, 128>}, {pipeline_mode = #tpu.pipeline_mode<synchronous>, transform_indices = @transform_2, window_bounds = array<i64: 1, 128>}, {transform_indices = @transform_3, window_bounds = array<i64: 8, 128>}]} {
    %c0_i32 = arith.constant 0 : i32
    %0 = arith.cmpi eq, %arg1, %c0_i32 : i32
    %1 = arith.extui %0 : i1 to i32
    %c0_i32_0 = arith.constant 0 : i32
    %2 = arith.cmpi ne, %1, %c0_i32_0 : i32
    scf.if %2 {
      %cst_10 = arith.constant 0.000000e+00 : f32
      %12 = vector.broadcast %cst_10 : f32 to vector<8x128xf32>
      %c0_11 = arith.constant 0 : index
      %c0_12 = arith.constant 0 : index
      %13 = vector.load %arg6[%c0_11, %c0_12] : memref<8x128xf32, #tpu.memory_space<vmem>>, vector<8x128xf32>
      tpu.vector_store %arg6[%c0_11, %c0_12], %12 {strides = array<i32>} : memref<8x128xf32, #tpu.memory_space<vmem>>, vector<8x128xf32>,
    } else {
    }
    %c0 = arith.constant 0 : index
    %c0_1 = arith.constant 0 : index
    %3 = vector.load %arg6[%c0, %c0_1] : memref<8x128xf32, #tpu.memory_space<vmem>>, vector<8x128xf32>
    %c0_2 = arith.constant 0 : index
    %c0_3 = arith.constant 0 : index
    %4 = vector.load %arg2[%c0_2, %c0_3] : memref<8x32xf32, #tpu.memory_space<vmem>>, vector<8x32xf32>
    %c0_4 = arith.constant 0 : index
    %c0_5 = arith.constant 0 : index
    %5 = vector.load %arg3[%c0_4, %c0_5] : memref<32x128xf32, #tpu.memory_space<vmem>>, vector<32x128xf32>
    %cst = arith.constant dense<0.000000e+00> : vector<8x128xf32>
    %6 = tpu.matmul %4, %5, %cst {dimension_numbers = #tpu.dot_dimension_numbers<[1], [0], [0], [1], [0, 0, 1, 1], [], []>} : vector<8x32xf32>, vector<32x128xf32>, vector<8x128xf32> -> vector<8x128xf32>
    %7 = arith.addf %3, %6 : vector<8x128xf32>
    %c0_6 = arith.constant 0 : index
    %c0_7 = arith.constant 0 : index
    %8 = vector.load %arg6[%c0_6, %c0_7] : memref<8x128xf32, #tpu.memory_space<vmem>>, vector<8x128xf32>
    tpu.vector_store %arg6[%c0_6, %c0_7], %7 {strides = array<i32>} : memref<8x128xf32, #tpu.memory_space<vmem>>, vector<8x128xf32>,
    %c0_i32_8 = arith.constant 0 : i32
    %9 = arith.cmpi eq, %arg1, %c0_i32_8 : i32
    %10 = arith.extui %9 : i1 to i32
    %c0_i32_9 = arith.constant 0 : i32
    %11 = arith.cmpi ne, %10, %c0_i32_9 : i32
    scf.if %11 {
      %c0_10 = arith.constant 0 : index
      %c0_11 = arith.constant 0 : index
      %12 = vector.load %arg6[%c0_10, %c0_11] : memref<8x128xf32, #tpu.memory_space<vmem>>, vector<8x128xf32>
      %c0_12 = arith.constant 0 : index
      %c0_13 = arith.constant 0 : index
      %13 = vector.load %arg4[%c0_12, %c0_13] : memref<1x128xf32, #tpu.memory_space<vmem>>, vector<1x128xf32>
      %14 = vector.broadcast %13 : vector<1x128xf32> to vector<8x128xf32>
      %15 = arith.addf %12, %14 : vector<8x128xf32>
      %cst_14 = arith.constant dense<0xFF800000> : vector<8xf32>
      %16 = vector.multi_reduction <maximumf>, %15, %cst_14 [1] : vector<8x128xf32> to vector<8xf32>
      %17 = vector.shape_cast %16 : vector<8xf32> to vector<8x1xf32>
      %18 = vector.broadcast %17 : vector<8x1xf32> to vector<8x128xf32>
      %19 = arith.subf %15, %18 : vector<8x128xf32>
      %20 = math.exp %19 : vector<8x128xf32>
      %cst_15 = arith.constant dense<0.000000e+00> : vector<8xf32>
      %21 = vector.multi_reduction <add>, %20, %cst_15 [1] : vector<8x128xf32> to vector<8xf32>
      %22 = vector.shape_cast %21 : vector<8xf32> to vector<8x1xf32>
      %23 = math.log %22 : vector<8x1xf32>
      %24 = vector.broadcast %23 : vector<8x1xf32> to vector<8x128xf32>
      %25 = arith.subf %19, %24 : vector<8x128xf32>
      %c0_16 = arith.constant 0 : index
      %c0_17 = arith.constant 0 : index
      %26 = vector.load %arg5[%c0_16, %c0_17] : memref<8x128xf32, #tpu.memory_space<vmem>>, vector<8x128xf32>
      tpu.vector_store %arg5[%c0_16, %c0_17], %25 {strides = array<i32>} : memref<8x128xf32, #tpu.memory_space<vmem>>, vector<8x128xf32>,
    } else {
    }
    return
  }
  func.func @transform_0(%arg0: i32, %arg1: i32) -> (i32, i32) {
    %c0_i32 = arith.constant 0 : i32
    return %arg0, %arg1 : i32, i32
  }
  func.func @transform_1(%arg0: i32, %arg1: i32) -> (i32, i32) {
    %c0_i32 = arith.constant 0 : i32
    %c0_i32_0 = arith.constant 0 : i32
    %c0_i32_1 = arith.constant 0 : i32
    return %c0_i32, %c0_i32_0 : i32, i32
  }
  func.func @transform_2(%arg0: i32, %arg1: i32) -> (i32, i32) {
    %c0_i32 = arith.constant 0 : i32
    %c0_i32_0 = arith.constant 0 : i32
    %c0_i32_1 = arith.constant 0 : i32
    return %c0_i32, %c0_i32_0 : i32, i32
  }
  func.func @transform_3(%arg0: i32, %arg1: i32) -> (i32, i32) {
    %c0_i32 = arith.constant 0 : i32
    %c0_i32_0 = arith.constant 0 : i32
    return %arg0, %c0_i32 : i32, i32
  }
}

module attributes {stable_mosaic.version = 11 : i64} {
  func.func @classifier_kernel(%arg0: i32, %arg1: i32, %arg2: memref<8x32xf32, #tpu.memory_space<vmem>>, %arg3: memref<32x128xf32, #tpu.memory_space<vmem>>, %arg4: memref<1x128xf32, #tpu.memory_space<vmem>>, %arg5: memref<8x128xf32, #tpu.memory_space<vmem>>, %arg6: memref<8x128xf32, #tpu.memory_space<vmem>>) attributes {dimension_semantics = [#tpu.dimension_semantics<parallel>, #tpu.dimension_semantics<arbitrary>], iteration_bounds = array<i64: 1, 1>, scalar_prefetch = 0 : i64, scratch_operands = 1 : i64, tpu.core_type = #tpu.core_type<tc>, window_params = [{transform_indices = @transform_0, window_bounds = array<i64: 8, 32>}, {pipeline_mode = #tpu.pipeline_mode<synchronous>, transform_indices = @transform_1, window_bounds = array<i64: 32, 128>}, {pipeline_mode = #tpu.pipeline_mode<synchronous>, transform_indices = @transform_2, window_bounds = array<i64: 1, 128>}, {transform_indices = @transform_3, window_bounds = array<i64: 8, 128>}]} {
    %c0_i32 = arith.constant 0 : i32
    %0 = arith.cmpi eq, %arg1, %c0_i32 : i32
    %1 = arith.extui %0 : i1 to i32
    %c0_i32_0 = arith.constant 0 : i32
    %2 = arith.cmpi ne, %1, %c0_i32_0 : i32
    scf.if %2 {
      %cst_10 = arith.constant 0.000000e+00 : f32
      %12 = vector.broadcast %cst_10 : f32 to vector<8x128xf32>
      %c0_11 = arith.constant 0 : index
      %c0_12 = arith.constant 0 : index
      %13 = vector.load %arg6[%c0_11, %c0_12] : memref<8x128xf32, #tpu.memory_space<vmem>>, vector<8x128xf32>
      tpu.vector_store %arg6[%c0_11, %c0_12], %12 {strides = array<i32>} : memref<8x128xf32, #tpu.memory_space<vmem>>, vector<8x128xf32>,
    } else {
    }
    %c0 = arith.constant 0 : index
    %c0_1 = arith.constant 0 : index
    %3 = vector.load %arg6[%c0, %c0_1] : memref<8x128xf32, #tpu.memory_space<vmem>>, vector<8x128xf32>
    %c0_2 = arith.constant 0 : index
    %c0_3 = arith.constant 0 : index
    %4 = vector.load %arg2[%c0_2, %c0_3] : memref<8x32xf32, #tpu.memory_space<vmem>>, vector<8x32xf32>
    %c0_4 = arith.constant 0 : index
    %c0_5 = arith.constant 0 : index
    %5 = vector.load %arg3[%c0_4, %c0_5] : memref<32x128xf32, #tpu.memory_space<vmem>>, vector<32x128xf32>
    %cst = arith.constant dense<0.000000e+00> : vector<8x128xf32>
    %6 = tpu.matmul %4, %5, %cst {dimension_numbers = #tpu.dot_dimension_numbers<[1], [0], [0], [1], [0, 0, 1, 1], [], []>} : vector<8x32xf32>, vector<32x128xf32>, vector<8x128xf32> -> vector<8x128xf32>
    %7 = arith.addf %3, %6 : vector<8x128xf32>
    %c0_6 = arith.constant 0 : index
    %c0_7 = arith.constant 0 : index
    %8 = vector.load %arg6[%c0_6, %c0_7] : memref<8x128xf32, #tpu.memory_space<vmem>>, vector<8x128xf32>
    tpu.vector_store %arg6[%c0_6, %c0_7], %7 {strides = array<i32>} : memref<8x128xf32, #tpu.memory_space<vmem>>, vector<8x128xf32>,
    %c0_i32_8 = arith.constant 0 : i32
    %9 = arith.cmpi eq, %arg1, %c0_i32_8 : i32
    %10 = arith.extui %9 : i1 to i32
    %c0_i32_9 = arith.constant 0 : i32
    %11 = arith.cmpi ne, %10, %c0_i32_9 : i32
    scf.if %11 {
      %c0_10 = arith.constant 0 : index
      %c0_11 = arith.constant 0 : index
      %12 = vector.load %arg6[%c0_10, %c0_11] : memref<8x128xf32, #tpu.memory_space<vmem>>, vector<8x128xf32>
      %c0_12 = arith.constant 0 : index
      %c0_13 = arith.constant 0 : index
      %13 = vector.load %arg4[%c0_12, %c0_13] : memref<1x128xf32, #tpu.memory_space<vmem>>, vector<1x128xf32>
      %14 = vector.broadcast %13 : vector<1x128xf32> to vector<8x128xf32>
      %15 = arith.addf %12, %14 : vector<8x128xf32>
      %cst_14 = arith.constant dense<0xFF800000> : vector<8xf32>
      %16 = vector.multi_reduction <maximumf>, %15, %cst_14 [1] : vector<8x128xf32> to vector<8xf32>
      %17 = vector.shape_cast %16 : vector<8xf32> to vector<8x1xf32>
      %18 = vector.broadcast %17 : vector<8x1xf32> to vector<8x128xf32>
      %19 = arith.subf %15, %18 : vector<8x128xf32>
      %20 = math.exp %19 : vector<8x128xf32>
      %cst_15 = arith.constant dense<0.000000e+00> : vector<8xf32>
      %21 = vector.multi_reduction <add>, %20, %cst_15 [1] : vector<8x128xf32> to vector<8xf32>
      %22 = vector.shape_cast %21 : vector<8xf32> to vector<8x1xf32>
      %23 = math.log %22 : vector<8x1xf32>
      %24 = vector.broadcast %23 : vector<8x1xf32> to vector<8x128xf32>
      %25 = arith.subf %19, %24 : vector<8x128xf32>
      %c0_16 = arith.constant 0 : index
      %c0_17 = arith.constant 0 : index
      %26 = vector.load %arg5[%c0_16, %c0_17] : memref<8x128xf32, #tpu.memory_space<vmem>>, vector<8x128xf32>
      tpu.vector_store %arg5[%c0_16, %c0_17], %25 {strides = array<i32>} : memref<8x128xf32, #tpu.memory_space<vmem>>, vector<8x128xf32>,
    } else {
    }
    return
  }
  func.func @transform_0(%arg0: i32, %arg1: i32) -> (i32, i32) {
    %c0_i32 = arith.constant 0 : i32
    return %arg0, %arg1 : i32, i32
  }
  func.func @transform_1(%arg0: i32, %arg1: i32) -> (i32, i32) {
    %c0_i32 = arith.constant 0 : i32
    %c0_i32_0 = arith.constant 0 : i32
    %c0_i32_1 = arith.constant 0 : i32
    return %c0_i32, %c0_i32_0 : i32, i32
  }
  func.func @transform_2(%arg0: i32, %arg1: i32) -> (i32, i32) {
    %c0_i32 = arith.constant 0 : i32
    %c0_i32_0 = arith.constant 0 : i32
    %c0_i32_1 = arith.constant 0 : i32
    return %c0_i32, %c0_i32_0 : i32, i32
  }
  func.func @transform_3(%arg0: i32, %arg1: i32) -> (i32, i32) {
    %c0_i32 = arith.constant 0 : i32
    %c0_i32_0 = arith.constant 0 : i32
    return %arg0, %c0_i32 : i32, i32
  }
}

</mosaic_0001>

<llo_original>
// kernel: tpu_custom_call.1
$region0: #{tpu_custom_call.1}
  #allocation0 [shape = 'u32[]', space=smem, size = 0x4, offset = 0x4, fixed_abs, tag = 'smem constant byte address 0x4 - core index']
  #allocation1 [shape = 'u32[72,128]{1,0:T(1,128)}', space=vmem, size = 0x9000, scoped, tag = 'internal scratch']
  #allocation2 [shape = 'f32[8,128]{1,0:T(8,128)}', space=vmem, size = 0x1000, scoped, tag = 'scratch operand']
  %s0 = inlined_call_operand.hbm [shape: f32[8,32], index: 0, kind: input, shape index: {}]
  %s1 = inlined_call_operand.hbm [shape: f32[32,128], index: 1, kind: input, shape index: {}]
  %s2 = inlined_call_operand.vmem [shape: f32[1,128], index: 2, kind: input, shape index: {}]
  %s3 = inlined_call_operand.hbm [shape: f32[8,128], index: 3, kind: output, shape index: {}]
  %s4 = sld [smem:[#allocation0]]
  $region38: #{tpu_custom_call.1} parent=0
    _
  %s6 = ssub.s32 1, %s4
  %s7 = scalar_select 0, %s6, %s4
  $region1: #{tpu_custom_call.1} parent=0
    #allocation3 [shape = 'u8[4096]{0}', space=vmem, size = 0x1000, scoped, tag = 'input window, operand 0, single buffered']
    #allocation4 [shape = 's32[1]{0}', space=sflag, size = 0x4, scoped, tag = 'scoped memory for tpu_custom_call.1']
    #allocation5 [shape = 's32[1]{0}', space=sflag, size = 0x4, scoped, tag = 'scoped memory for tpu_custom_call.1']
    #allocation6 [shape = 'u8[16384]{0}', space=vmem, size = 0x4000, scoped, tag = 'input window, operand 1, single buffered']
    #allocation7 [shape = 's32[1]{0}', space=sflag, size = 0x4, scoped, tag = 'scoped memory for tpu_custom_call.1']
    #allocation8 [shape = 'u8[4096]{0}', space=vmem, size = 0x1000, scoped, tag = 'output window, operand 0, single buffered']
    %8 = vsyncpa [#allocation4], 0
    %9 = vsyncpa [#allocation7], 0
    %10 = vsyncpa [#allocation5], 0
    // Predicated region
    $region2: #{tpu_custom_call.1} parent=1 // pred_check
      _
    $region3: #{tpu_custom_call.1} parent=1 // pred_check_branch
      %12 = sbr.rel (0) target = $region5
    $region4: #{tpu_custom_call.1} parent=1 // pred_region
      %14 = vsyncadd [#allocation4], 0
      %s16 = sshll.u32 %s0, 4
      %s17 = int_to_ptr.hbm [resolvable:$true] %s16
      %s18 = sshll.u32 [#allocation3], 4
      %s19 = int_to_ptr.vmem [resolvable:$true] %s18
      %21 = dma.hbm_to_vmem [thread:$0]  %s17, 128, %s19, [#allocation4]
    $region5: #{tpu_custom_call.1} parent=1 // pred_fallthru
      _
    // Predicated region
    $region6: #{tpu_custom_call.1} parent=1 // pred_check
      _
    $region7: #{tpu_custom_call.1} parent=1 // pred_check_branch
      %23 = sbr.rel (0) target = $region9
    $region8: #{tpu_custom_call.1} parent=1 // pred_region
      %25 = vsyncadd [#allocation7], 0
      %s26 = sshll.u32 %s1, 4
      %s27 = int_to_ptr.hbm [resolvable:$true] %s26
      %s28 = sshll.u32 [#allocation6], 4
      %s29 = int_to_ptr.vmem [resolvable:$true] %s28
      %34 = dma.hbm_to_vmem [thread:$0]  %s27, 512, %s29, [#allocation7], 128, 128, 8
    $region9: #{tpu_custom_call.1} parent=1 // pred_fallthru
      _
    // Predicated region
    $region10: #{tpu_custom_call.1} parent=1 // pred_check
      _
    $region11: #{tpu_custom_call.1} parent=1 // pred_check_branch
      %36 = sbr.rel (0) target = $region13
    $region12: #{tpu_custom_call.1} parent=1 // pred_region
      _
    $region13: #{tpu_custom_call.1} parent=1 // pred_fallthru
      _
    // Predicated region
    $region14: #{tpu_custom_call.1} parent=1 // pred_check
      _
    $region15: #{tpu_custom_call.1} parent=1 // pred_check_branch
      %38 = sbr.rel (0) target = $region17
    $region16: #{tpu_custom_call.1} parent=1 // pred_region
      %40 = dma.done [#allocation4], 128
    $region17: #{tpu_custom_call.1} parent=1 // pred_fallthru
      _
    // Predicated region
    $region18: #{tpu_custom_call.1} parent=1 // pred_check
      _
    $region19: #{tpu_custom_call.1} parent=1 // pred_check_branch
      %42 = sbr.rel (0) target = $region21
    $region20: #{tpu_custom_call.1} parent=1 // pred_region
      %44 = dma.done [#allocation7], 512
    $region21: #{tpu_custom_call.1} parent=1 // pred_fallthru
      _
    %p45 = scmp.eq.s32.totalorder 0, 0
    // Predicated region
    $region22: #{tpu_custom_call.1} parent=1 // pred_check
      %p46 = pneg %p45
    $region23: #{tpu_custom_call.1} parent=1 // pred_check_branch
      %48 = sbr.rel (%p46) target = $region25
    $region24: #{tpu_custom_call.1} parent=1 // pred_region
      %49 = vst [vmem:[#allocation2] sm:$0xff] 0.0
    $region25: #{tpu_custom_call.1} parent=1 // pred_fallthru
      _
    %v50 = vld [vmem:[#allocation2] sm:$0xff]
    %v51 = vld [vmem:[#allocation3] sm:$0xff]
    %v52 = vld [vmem:[#allocation6] sm:$0xff]
    %v53 = vld [vmem:[#allocation6 + $0x8] sm:$0xff]
    %v54 = vld [vmem:[#allocation6 + $0x10] sm:$0xff]
    %v55 = vld [vmem:[#allocation6 + $0x18] sm:$0xff]
    %vm56 = vcmask 261120
    %v58 = vsel %vm56, %v51, 0
    %60 = vmatpush.msra.mxu0 0.0
    %61 = vmatpush.msra.mxu0 0.0
    %62 = vmatpush.msra.mxu0 0.0
    %63 = vmatpush.msra.mxu0 0.0
    %64 = vmatpush.msra.mxu0 0.0
    %65 = vmatpush.msra.mxu0 0.0
    %66 = vmatpush.msra.mxu0 0.0
    %67 = vmatpush.msra.mxu0 0.0
    %68 = vmatpush.msra.mxu0 0.0
    %69 = vmatpush.msra.mxu0 0.0
    %70 = vmatpush.msra.mxu0 0.0
    %71 = vmatpush.msra.mxu0 0.0
    %72 = vmatpush.msra.mxu0 %v55
    %73 = vmatpush.msra.mxu0 %v54
    %74 = vmatpush.msra.mxu0 %v53
    %75 = vmatpush.msra.mxu0 %v52
    %76 = vmatmul.f32.gmra.mxu0 %v58
    %v77 = vpop.f32.mrf.mxu0
    %v78 = vadd.f32 0.0, %v77
    %79 = vdwg.mxu0
    %v80 = vadd.f32 %v50, %v78
    %81 = vst [vmem:[#allocation2] sm:$0xff] %v80
    // Predicated region
    $region26: #{tpu_custom_call.1} parent=1 // pred_check
      %p82 = pneg %p45
    $region27: #{tpu_custom_call.1} parent=1 // pred_check_branch
      %84 = sbr.rel (%p82) target = $region29
    $region28: #{tpu_custom_call.1} parent=1 // pred_region
      %v85 = vld [vmem:[#allocation2] sm:$0xff]
      %v86 = vld [vmem:[%s2] sm:$0x1]
      %v88 = vperm.slane %v86, 0
      %v90 = vadd.f32 %v85, %v88
      %91 = vmax.xlane.f32.xlu0 %v90
      %v92 = vpop.xlane.xlu0 %91
      %v93 = vsub.f32 %v90, %v92
      %v94 = vmul.f32 %v93, 1.442695
      %v95 = vpow.pop %v94
      %96 = vadd.xlane.f32.xlu0 %v95
      %v97 = vpop.xlane.xlu0 %96
      %v98 = vlog2.pop %v97
      %v99 = vmul.f32 %v98, 0.6931472
      %v100 = vsub.f32 %v93, %v99
      %101 = vst [vmem:[#allocation8] sm:$0xff] %v100
    $region29: #{tpu_custom_call.1} parent=1 // pred_fallthru
      _
    // Predicated region
    $region30: #{tpu_custom_call.1} parent=1 // pred_check
      _
    $region31: #{tpu_custom_call.1} parent=1 // pred_check_branch
      %103 = sbr.rel (0) target = $region33
    $region32: #{tpu_custom_call.1} parent=1 // pred_region
      %105 = vsyncadd [#allocation5], 0
      %s107 = sshll.u32 [#allocation8], 4
      %s108 = int_to_ptr.vmem [resolvable:$true] %s107
      %s109 = sshll.u32 %s3, 4
      %s110 = int_to_ptr.hbm [resolvable:$true] %s109
      %112 = dma.vmem_to_hbm [thread:$0]  %s108, 128, %s110, [#allocation5]
    $region33: #{tpu_custom_call.1} parent=1 // pred_fallthru
      _
    // Predicated region
    $region34: #{tpu_custom_call.1} parent=1 // pred_check
      _
    $region35: #{tpu_custom_call.1} parent=1 // pred_check_branch
      %114 = sbr.rel (0) target = $region37
    $region36: #{tpu_custom_call.1} parent=1 // pred_region
      %116 = dma.done [#allocation5], 128
    $region37: #{tpu_custom_call.1} parent=1 // pred_fallthru
      _
    %117 = vsyncpa [#allocation4], 1
    %118 = vsyncpa [#allocation7], 1
    %119 = vsyncpa [#allocation5], 1

// kernel: tpu_custom_call.1
$region0: #{tpu_custom_call.1}
  #allocation0 [shape = 'u32[]', space=smem, size = 0x4, offset = 0x4, fixed_abs, tag = 'smem constant byte address 0x4 - core index']
  #allocation1 [shape = 'u32[72,128]{1,0:T(1,128)}', space=vmem, size = 0x9000, scoped, tag = 'internal scratch']
  #allocation2 [shape = 'f32[8,128]{1,0:T(8,128)}', space=vmem, size = 0x1000, scoped, tag = 'scratch operand']
  %s0 = inlined_call_operand.hbm [shape: f32[8,32], index: 0, kind: input, shape index: {}]
  %s1 = inlined_call_operand.hbm [shape: f32[32,128], index: 1, kind: input, shape index: {}]
  %s2 = inlined_call_operand.vmem [shape: f32[1,128], index: 2, kind: input, shape index: {}]
  %s3 = inlined_call_operand.hbm [shape: f32[8,128], index: 3, kind: output, shape index: {}]
  %s4 = sld [smem:[#allocation0]]
  $region38: #{tpu_custom_call.1} parent=0
    _
  %s6 = ssub.s32 1, %s4
  %s7 = scalar_select 0, %s6, %s4
  $region1: #{tpu_custom_call.1} parent=0
    #allocation3 [shape = 'u8[4096]{0}', space=vmem, size = 0x1000, scoped, tag = 'input window, operand 0, single buffered']
    #allocation4 [shape = 's32[1]{0}', space=sflag, size = 0x4, scoped, tag = 'scoped memory for tpu_custom_call.1']
    #allocation5 [shape = 's32[1]{0}', space=sflag, size = 0x4, scoped, tag = 'scoped memory for tpu_custom_call.1']
    #allocation6 [shape = 'u8[16384]{0}', space=vmem, size = 0x4000, scoped, tag = 'input window, operand 1, single buffered']
    #allocation7 [shape = 's32[1]{0}', space=sflag, size = 0x4, scoped, tag = 'scoped memory for tpu_custom_call.1']
    #allocation8 [shape = 'u8[4096]{0}', space=vmem, size = 0x1000, scoped, tag = 'output window, operand 0, single buffered']
    %8 = vsyncpa [#allocation4], 0
    %9 = vsyncpa [#allocation7], 0
    %10 = vsyncpa [#allocation5], 0
    // Predicated region
    $region2: #{tpu_custom_call.1} parent=1 // pred_check
      _
    $region3: #{tpu_custom_call.1} parent=1 // pred_check_branch
      %12 = sbr.rel (0) target = $region5
    $region4: #{tpu_custom_call.1} parent=1 // pred_region
      %14 = vsyncadd [#allocation4], 0
      %s16 = sshll.u32 %s0, 4
      %s17 = int_to_ptr.hbm [resolvable:$true] %s16
      %s18 = sshll.u32 [#allocation3], 4
      %s19 = int_to_ptr.vmem [resolvable:$true] %s18
      %21 = dma.hbm_to_vmem [thread:$0]  %s17, 128, %s19, [#allocation4]
    $region5: #{tpu_custom_call.1} parent=1 // pred_fallthru
      _
    // Predicated region
    $region6: #{tpu_custom_call.1} parent=1 // pred_check
      _
    $region7: #{tpu_custom_call.1} parent=1 // pred_check_branch
      %23 = sbr.rel (0) target = $region9
    $region8: #{tpu_custom_call.1} parent=1 // pred_region
      %25 = vsyncadd [#allocation7], 0
      %s26 = sshll.u32 %s1, 4
      %s27 = int_to_ptr.hbm [resolvable:$true] %s26
      %s28 = sshll.u32 [#allocation6], 4
      %s29 = int_to_ptr.vmem [resolvable:$true] %s28
      %34 = dma.hbm_to_vmem [thread:$0]  %s27, 512, %s29, [#allocation7], 128, 128, 8
    $region9: #{tpu_custom_call.1} parent=1 // pred_fallthru
      _
    // Predicated region
    $region10: #{tpu_custom_call.1} parent=1 // pred_check
      _
    $region11: #{tpu_custom_call.1} parent=1 // pred_check_branch
      %36 = sbr.rel (0) target = $region13
    $region12: #{tpu_custom_call.1} parent=1 // pred_region
      _
    $region13: #{tpu_custom_call.1} parent=1 // pred_fallthru
      _
    // Predicated region
    $region14: #{tpu_custom_call.1} parent=1 // pred_check
      _
    $region15: #{tpu_custom_call.1} parent=1 // pred_check_branch
      %38 = sbr.rel (0) target = $region17
    $region16: #{tpu_custom_call.1} parent=1 // pred_region
      %40 = dma.done [#allocation4], 128
    $region17: #{tpu_custom_call.1} parent=1 // pred_fallthru
      _
    // Predicated region
    $region18: #{tpu_custom_call.1} parent=1 // pred_check
      _
    $region19: #{tpu_custom_call.1} parent=1 // pred_check_branch
      %42 = sbr.rel (0) target = $region21
    $region20: #{tpu_custom_call.1} parent=1 // pred_region
      %44 = dma.done [#allocation7], 512
    $region21: #{tpu_custom_call.1} parent=1 // pred_fallthru
      _
    %p45 = scmp.eq.s32.totalorder 0, 0
    // Predicated region
    $region22: #{tpu_custom_call.1} parent=1 // pred_check
      %p46 = pneg %p45
    $region23: #{tpu_custom_call.1} parent=1 // pred_check_branch
      %48 = sbr.rel (%p46) target = $region25
    $region24: #{tpu_custom_call.1} parent=1 // pred_region
      %49 = vst [vmem:[#allocation2] sm:$0xff] 0.0
    $region25: #{tpu_custom_call.1} parent=1 // pred_fallthru
      _
    %v50 = vld [vmem:[#allocation2] sm:$0xff]
    %v51 = vld [vmem:[#allocation3] sm:$0xff]
    %v52 = vld [vmem:[#allocation6] sm:$0xff]
    %v53 = vld [vmem:[#allocation6 + $0x8] sm:$0xff]
    %v54 = vld [vmem:[#allocation6 + $0x10] sm:$0xff]
    %v55 = vld [vmem:[#allocation6 + $0x18] sm:$0xff]
    %vm56 = vcmask 261120
    %v58 = vsel %vm56, %v51, 0
    %60 = vmatpush.msra.mxu0 0.0
    %61 = vmatpush.msra.mxu0 0.0
    %62 = vmatpush.msra.mxu0 0.0
    %63 = vmatpush.msra.mxu0 0.0
    %64 = vmatpush.msra.mxu0 0.0
    %65 = vmatpush.msra.mxu0 0.0
    %66 = vmatpush.msra.mxu0 0.0
    %67 = vmatpush.msra.mxu0 0.0
    %68 = vmatpush.msra.mxu0 0.0
    %69 = vmatpush.msra.mxu0 0.0
    %70 = vmatpush.msra.mxu0 0.0
    %71 = vmatpush.msra.mxu0 0.0
    %72 = vmatpush.msra.mxu0 %v55
    %73 = vmatpush.msra.mxu0 %v54
    %74 = vmatpush.msra.mxu0 %v53
    %75 = vmatpush.msra.mxu0 %v52
    %76 = vmatmul.f32.gmra.mxu0 %v58
    %v77 = vpop.f32.mrf.mxu0
    %v78 = vadd.f32 0.0, %v77
    %79 = vdwg.mxu0
    %v80 = vadd.f32 %v50, %v78
    %81 = vst [vmem:[#allocation2] sm:$0xff] %v80
    // Predicated region
    $region26: #{tpu_custom_call.1} parent=1 // pred_check
      %p82 = pneg %p45
    $region27: #{tpu_custom_call.1} parent=1 // pred_check_branch
      %84 = sbr.rel (%p82) target = $region29
    $region28: #{tpu_custom_call.1} parent=1 // pred_region
      %v85 = vld [vmem:[#allocation2] sm:$0xff]
      %v86 = vld [vmem:[%s2] sm:$0x1]
      %v88 = vperm.slane %v86, 0
      %v90 = vadd.f32 %v85, %v88
      %91 = vmax.xlane.f32.xlu0 %v90
      %v92 = vpop.xlane.xlu0 %91
      %v93 = vsub.f32 %v90, %v92
      %v94 = vmul.f32 %v93, 1.442695
      %v95 = vpow.pop %v94
      %96 = vadd.xlane.f32.xlu0 %v95
      %v97 = vpop.xlane.xlu0 %96
      %v98 = vlog2.pop %v97
      %v99 = vmul.f32 %v98, 0.6931472
      %v100 = vsub.f32 %v93, %v99
      %101 = vst [vmem:[#allocation8] sm:$0xff] %v100
    $region29: #{tpu_custom_call.1} parent=1 // pred_fallthru
      _
    // Predicated region
    $region30: #{tpu_custom_call.1} parent=1 // pred_check
      _
    $region31: #{tpu_custom_call.1} parent=1 // pred_check_branch
      %103 = sbr.rel (0) target = $region33
    $region32: #{tpu_custom_call.1} parent=1 // pred_region
      %105 = vsyncadd [#allocation5], 0
      %s107 = sshll.u32 [#allocation8], 4
      %s108 = int_to_ptr.vmem [resolvable:$true] %s107
      %s109 = sshll.u32 %s3, 4
      %s110 = int_to_ptr.hbm [resolvable:$true] %s109
      %112 = dma.vmem_to_hbm [thread:$0]  %s108, 128, %s110, [#allocation5]
    $region33: #{tpu_custom_call.1} parent=1 // pred_fallthru
      _
    // Predicated region
    $region34: #{tpu_custom_call.1} parent=1 // pred_check
      _
    $region35: #{tpu_custom_call.1} parent=1 // pred_check_branch
      %114 = sbr.rel (0) target = $region37
    $region36: #{tpu_custom_call.1} parent=1 // pred_region
      %116 = dma.done [#allocation5], 128
    $region37: #{tpu_custom_call.1} parent=1 // pred_fallthru
      _
    %117 = vsyncpa [#allocation4], 1
    %118 = vsyncpa [#allocation7], 1
    %119 = vsyncpa [#allocation5], 1

</llo_original>
